<compile_context>
chip_gen: v6e
topology: v6e:2x2x1
jax: 0.10.0
libtpu: 0.0.40
codegen_flags: <defaults>
</compile_context>

<pallas_src>
import functools

import numpy as np

import jax
import jax.numpy as jnp
from jax.experimental import pallas as pl
from jax.experimental.pallas import tpu as pltpu

KH, KW = 3, 3
CIN, COUT = 3, 3


def _blur_conv_kernel(w_ref, x_ref, halo_ref, o_ref, *, structure):
    """One (image, H-tile) grid step of the 3x3 / pad=1 / stride=1 conv.

    w_ref:    SMEM (COUT*CIN*9,) f32  flattened conv weight (scalar reads).
    x_ref:    VMEM (1, CIN, TH, W)    unpadded input tile.
    halo_ref: VMEM (1, 1, 2*CIN, W)   image rows just above/below this tile
                                      (pre-zeroed at the image border, i.e.
                                      the fused H zero-padding).
    o_ref:    VMEM (1, COUT, TH, W)   output tile.
    structure: static numpy bool (COUT, CIN, 3, 3); False -> weight is exactly
               zero and the FMA is skipped at trace time.
    """
    _, cin, th, w = x_ref.shape
    cout = o_ref.shape[1]

    x = x_ref[...].astype(jnp.float32)[0]              # (CIN, TH, W)
    halo = halo_ref[...].astype(jnp.float32)[0, 0]     # (2*CIN, W)
    top = halo[:cin][:, None, :]                       # (CIN, 1, W) row above tile
    bot = halo[cin:][:, None, :]                       # (CIN, 1, W) row below tile

    row = jax.lax.broadcasted_iota(jnp.int32, (cin, th, w), 1)
    col = jax.lax.broadcasted_iota(jnp.int32, (cin, th, w), 2)

    def vshift(dh):
        # out[:, r, :] = extended_rows[:, r + dh, :]   (halo rows at r = -1, TH)
        if dh == 0:
            return x
        if dh == 1:
            rolled = pltpu.roll(x, shift=(th - 1) % th, axis=1)   # r -> r+1
            return jnp.where(row == th - 1, bot, rolled)
        rolled = pltpu.roll(x, shift=1 % th, axis=1)              # r -> r-1
        return jnp.where(row == 0, top, rolled)

    def hshift(v, dw):
        # out[:, :, c] = v[:, :, c + dw], zero outside [0, W)  (fused W pad)
        if dw == 0:
            return v
        if dw == 1:
            rolled = pltpu.roll(v, shift=(w - 1) % w, axis=2)     # c -> c+1
            return jnp.where(col == w - 1, 0.0, rolled)
        rolled = pltpu.roll(v, shift=1 % w, axis=2)               # c -> c-1
        return jnp.where(col == 0, 0.0, rolled)

    accs = [jnp.zeros((th, w), jnp.float32) for _ in range(cout)]
    for kh in range(KH):
        if not structure[:, :, kh, :].any():
            continue
        v = vshift(kh - 1)                          # reused for all kw/co/ci
        for kw in range(KW):
            if not structure[:, :, kh, kw].any():
                continue
            patch = hshift(v, kw - 1)               # (CIN, TH, W), reused
            for ci in range(cin):
                if not structure[:, ci, kh, kw].any():
                    continue
                p_ci = patch[ci]                    # (TH, W)
                for co in range(cout):
                    if not structure[co, ci, kh, kw]:
                        continue                    # exact-zero weight: skip FMA
                    wv = w_ref[((co * cin + ci) * KH + kh) * KW + kw]
                    accs[co] = accs[co] + p_ci * wv

    out = jnp.stack(accs, axis=0)[None]             # (1, COUT, TH, W)
    o_ref[...] = out.astype(o_ref.dtype)


def _pick_tile_h(h, cap=256):
    """Largest multiple-of-8 divisor of h that is <= cap (or h itself)."""
    if h % 8 != 0:
        return h
    best = 8
    for cand in range(8, min(h, cap) + 1, 8):
        if h % cand == 0:
            best = cand
    return best


def make_blur_weight():
    """Same weight nn.Conv2d gets in BlurModule.__init__: each output channel
    is a 1/9 box blur of the matching input channel (block-diagonal)."""
    a = np.ones((KH, KW), np.float32) / float(KH * KW)
    w = np.zeros((COUT, CIN, KH, KW), np.float32)
    for c in range(min(COUT, CIN)):
        w[c, c] = a
    return w


def blur_forward(x, weight, weight_structure=None, tile_h=None):
    """x: (N, 3, H, W) NCHW.  weight: (3, 3, 3, 3) OIHW.  Returns (N, 3, H, W).

    weight_structure: optional static bool mask of non-zero weight taps (lets
    the kernel skip exact-zero FMAs, e.g. BlurModule's block-diagonal weight).
    tile_h: output rows per grid tile (multiple of 8 dividing H, or H itself).
    """
    n, c, h, w = x.shape
    assert c == CIN, f"expected {CIN} input channels, got {c}"
    assert weight.shape == (COUT, CIN, KH, KW)

    if weight_structure is None:
        structure = np.ones((COUT, CIN, KH, KW), dtype=bool)
    else:
        structure = np.asarray(weight_structure, dtype=bool)
        assert structure.shape == (COUT, CIN, KH, KW)

    th = _pick_tile_h(h) if tile_h is None else int(tile_h)
    if h % th != 0 or (th % 8 != 0 and th != h):
        raise ValueError(f"tile_h={th} must divide H={h} and be a multiple of 8 (or H)")
    t = h // th

    # Tiny halo side-input: for every tile, the image row just above and just
    # below it, zeroed at the image border (this is the fused H zero-padding).
    # Shape (N, T, 2*CIN, W): only 2*T extra rows per image of HBM traffic.
    t_idx = np.arange(t)
    top_src = t_idx * th - 1
    bot_src = t_idx * th + th
    top_rows = x[:, :, np.clip(top_src, 0, h - 1), :]        # (N, C, T, W)
    bot_rows = x[:, :, np.clip(bot_src, 0, h - 1), :]        # (N, C, T, W)
    top_rows = top_rows * jnp.asarray(top_src >= 0, dtype=x.dtype)[None, None, :, None]
    bot_rows = bot_rows * jnp.asarray(bot_src <= h - 1, dtype=x.dtype)[None, None, :, None]
    halo = jnp.concatenate([top_rows, bot_rows], axis=1)     # (N, 2C, T, W)
    halo = jnp.transpose(halo, (0, 2, 1, 3))                 # (N, T, 2C, W)

    w_flat = jnp.asarray(weight, jnp.float32).reshape(-1)    # (81,) scalars -> SMEM

    kernel = functools.partial(_blur_conv_kernel, structure=structure)
    return pl.pallas_call(
        kernel,
        out_shape=jax.ShapeDtypeStruct((n, COUT, h, w), x.dtype),
        grid=(n, t),
        in_specs=[
            pl.BlockSpec(memory_space=pltpu.MemorySpace.SMEM),          # weights
            pl.BlockSpec((1, CIN, th, w), lambda ni, ti: (ni, 0, ti, 0)),
            pl.BlockSpec((1, 1, 2 * CIN, w), lambda ni, ti: (ni, ti, 0, 0)),
        ],
        out_specs=pl.BlockSpec((1, COUT, th, w), lambda ni, ti: (ni, 0, ti, 0)),
        compiler_params=pltpu.CompilerParams(
            dimension_semantics=("parallel", "parallel")),
    )(w_flat, x, halo)


if __name__ == "__main__":
    key = jax.random.PRNGKey(0)
    n, c, h, w = 2, 3, 16, 16
    x = jax.random.normal(key, (n, c, h, w), dtype=jnp.float32)

    w_np = make_blur_weight()
    weight = jnp.asarray(w_np)

    # Reference: XLA conv with the same semantics as nn.Conv2d (NCHW / OIHW).
    ref = jax.lax.conv_general_dilated(
        x, weight, window_strides=(1, 1), padding=((1, 1), (1, 1)),
        dimension_numbers=("NCHW", "OIHW", "NCHW"))
    ref = jax.block_until_ready(ref)

    # Tiled path: 2 H-tiles per image (exercises the halo rows) and the
    # block-diagonal weight structure (27 FMAs per tile instead of 81).
    out = blur_forward(x, weight, weight_structure=(w_np != 0), tile_h=8)
    out = jax.block_until_ready(out)
    assert out.shape == (n, COUT, h, w)
    assert jnp.allclose(out, ref, atol=1e-5, rtol=1e-5)

    # General path: auto tile size, dense weight handling (no structure hint).
    out_dense = jax.block_until_ready(blur_forward(x, weight))
    assert jnp.allclose(out_dense, ref, atol=1e-5, rtol=1e-5)

    print("KERNEL_OK")
</pallas_src>

<mosaic_0001>
module attributes {stable_mosaic.version = 11 : i64} {
  func.func @_blur_conv_kernel(%arg0: i32, %arg1: i32, %arg2: memref<81xf32, #tpu.memory_space<smem>>, %arg3: memref<1x3x8x16xf32, #tpu.memory_space<vmem>>, %arg4: memref<1x1x6x16xf32, #tpu.memory_space<vmem>>, %arg5: memref<1x3x8x16xf32, #tpu.memory_space<vmem>>) attributes {dimension_semantics = [#tpu.dimension_semantics<parallel>, #tpu.dimension_semantics<parallel>], iteration_bounds = array<i64: 2, 2>, scalar_prefetch = 0 : i64, scratch_operands = 0 : i64, tpu.core_type = #tpu.core_type<tc>, window_params = [{transform_indices = @transform_0, window_bounds = array<i64: 81>}, {transform_indices = @transform_1, window_bounds = array<i64: 1, 3, 8, 16>}, {transform_indices = @transform_2, window_bounds = array<i64: 1, 1, 6, 16>}, {transform_indices = @transform_3, window_bounds = array<i64: 1, 3, 8, 16>}]} {
    %c0 = arith.constant 0 : index
    %c0_0 = arith.constant 0 : index
    %c0_1 = arith.constant 0 : index
    %c0_2 = arith.constant 0 : index
    %0 = vector.load %arg3[%c0, %c0_0, %c0_1, %c0_2] : memref<1x3x8x16xf32, #tpu.memory_space<vmem>>, vector<1x3x8x16xf32>
    %1 = vector.shape_cast %0 : vector<1x3x8x16xf32> to vector<3x8x16xf32>
    %c0_3 = arith.constant 0 : index
    %c0_4 = arith.constant 0 : index
    %c0_5 = arith.constant 0 : index
    %c0_6 = arith.constant 0 : index
    %2 = vector.load %arg4[%c0_3, %c0_4, %c0_5, %c0_6] : memref<1x1x6x16xf32, #tpu.memory_space<vmem>>, vector<1x1x6x16xf32>
    %3 = vector.shape_cast %2 : vector<1x1x6x16xf32> to vector<6x16xf32>
    %4 = vector.extract_strided_slice %3 {offsets = [0, 0], sizes = [3, 16], strides = [1, 1]} : vector<6x16xf32> to vector<3x16xf32>
    %5 = vector.shape_cast %4 : vector<3x16xf32> to vector<3x1x16xf32>
    %6 = vector.extract_strided_slice %3 {offsets = [3, 0], sizes = [3, 16], strides = [1, 1]} : vector<6x16xf32> to vector<3x16xf32>
    %7 = vector.shape_cast %6 : vector<3x16xf32> to vector<3x1x16xf32>
    %8 = tpu.iota {dimensions = array<i32: 1>} : vector<3x8x16xi32>
    %9 = tpu.iota {dimensions = array<i32: 2>} : vector<3x8x16xi32>
    %cst = arith.constant 0.000000e+00 : f32
    %10 = vector.broadcast %cst : f32 to vector<8x16xf32>
    %cst_7 = arith.constant 0.000000e+00 : f32
    %11 = vector.broadcast %cst_7 : f32 to vector<8x16xf32>
    %cst_8 = arith.constant 0.000000e+00 : f32
    %12 = vector.broadcast %cst_8 : f32 to vector<8x16xf32>
    %c1_i32 = arith.constant 1 : i32
    %13 = tpu.dynamic_rotate %1 by %c1_i32 dim 1 : vector<3x8x16xf32>, i32 -> vector<3x8x16xf32>
    %c0_i32 = arith.constant 0 : i32
    %14 = vector.broadcast %c0_i32 : i32 to vector<3x8x16xi32>
    %15 = arith.cmpi eq, %8, %14 : vector<3x8x16xi32>
    %16 = vector.shape_cast %5 : vector<3x1x16xf32> to vector<3x1x16xf32>
    %17 = vector.broadcast %16 : vector<3x1x16xf32> to vector<3x8x16xf32>
    %18 = arith.select %15, %17, %13 : vector<3x8x16xi1>, vector<3x8x16xf32>
    %c1_i32_9 = arith.constant 1 : i32
    %19 = tpu.dynamic_rotate %18 by %c1_i32_9 dim 2 : vector<3x8x16xf32>, i32 -> vector<3x8x16xf32>
    %c0_i32_10 = arith.constant 0 : i32
    %20 = vector.broadcast %c0_i32_10 : i32 to vector<3x8x16xi32>
    %21 = arith.cmpi eq, %9, %20 : vector<3x8x16xi32>
    %cst_11 = arith.constant 0.000000e+00 : f32
    %22 = vector.broadcast %cst_11 : f32 to vector<3x8x16xf32>
    %23 = arith.select %21, %22, %19 : vector<3x8x16xi1>, vector<3x8x16xf32>
    %24 = vector.extract_strided_slice %23 {offsets = [0, 0, 0], sizes = [1, 8, 16], strides = [1, 1, 1]} : vector<3x8x16xf32> to vector<1x8x16xf32>
    %25 = vector.shape_cast %24 : vector<1x8x16xf32> to vector<8x16xf32>
    %c0_12 = arith.constant 0 : index
    %26 = memref.load %arg2[%c0_12] : memref<81xf32, #tpu.memory_space<smem>>
    %27 = vector.broadcast %26 : f32 to vector<8x16xf32>
    %28 = arith.mulf %25, %27 : vector<8x16xf32>
    %29 = arith.addf %10, %28 : vector<8x16xf32>
    %30 = vector.extract_strided_slice %23 {offsets = [1, 0, 0], sizes = [1, 8, 16], strides = [1, 1, 1]} : vector<3x8x16xf32> to vector<1x8x16xf32>
    %31 = vector.shape_cast %30 : vector<1x8x16xf32> to vector<8x16xf32>
    %c36 = arith.constant 36 : index
    %32 = memref.load %arg2[%c36] : memref<81xf32, #tpu.memory_space<smem>>
    %33 = vector.broadcast %32 : f32 to vector<8x16xf32>
    %34 = arith.mulf %31, %33 : vector<8x16xf32>
    %35 = arith.addf %11, %34 : vector<8x16xf32>
    %36 = vector.extract_strided_slice %23 {offsets = [2, 0, 0], sizes = [1, 8, 16], strides = [1, 1, 1]} : vector<3x8x16xf32> to vector<1x8x16xf32>
    %37 = vector.shape_cast %36 : vector<1x8x16xf32> to vector<8x16xf32>
    %c72 = arith.constant 72 : index
    %38 = memref.load %arg2[%c72] : memref<81xf32, #tpu.memory_space<smem>>
    %39 = vector.broadcast %38 : f32 to vector<8x16xf32>
    %40 = arith.mulf %37, %39 : vector<8x16xf32>
    %41 = arith.addf %12, %40 : vector<8x16xf32>
    %42 = vector.extract_strided_slice %18 {offsets = [0, 0, 0], sizes = [1, 8, 16], strides = [1, 1, 1]} : vector<3x8x16xf32> to vector<1x8x16xf32>
    %43 = vector.shape_cast %42 : vector<1x8x16xf32> to vector<8x16xf32>
    %c1 = arith.constant 1 : index
    %44 = memref.load %arg2[%c1] : memref<81xf32, #tpu.memory_space<smem>>
    %45 = vector.broadcast %44 : f32 to vector<8x16xf32>
    %46 = arith.mulf %43, %45 : vector<8x16xf32>
    %47 = arith.addf %29, %46 : vector<8x16xf32>
    %48 = vector.extract_strided_slice %18 {offsets = [1, 0, 0], sizes = [1, 8, 16], strides = [1, 1, 1]} : vector<3x8x16xf32> to vector<1x8x16xf32>
    %49 = vector.shape_cast %48 : vector<1x8x16xf32> to vector<8x16xf32>
    %c37 = arith.constant 37 : index
    %50 = memref.load %arg2[%c37] : memref<81xf32, #tpu.memory_space<smem>>
    %51 = vector.broadcast %50 : f32 to vector<8x16xf32>
    %52 = arith.mulf %49, %51 : vector<8x16xf32>
    %53 = arith.addf %35, %52 : vector<8x16xf32>
    %54 = vector.extract_strided_slice %18 {offsets = [2, 0, 0], sizes = [1, 8, 16], strides = [1, 1, 1]} : vector<3x8x16xf32> to vector<1x8x16xf32>
    %55 = vector.shape_cast %54 : vector<1x8x16xf32> to vector<8x16xf32>
    %c73 = arith.constant 73 : index
    %56 = memref.load %arg2[%c73] : memref<81xf32, #tpu.memory_space<smem>>
    %57 = vector.broadcast %56 : f32 to vector<8x16xf32>
    %58 = arith.mulf %55, %57 : vector<8x16xf32>
    %59 = arith.addf %41, %58 : vector<8x16xf32>
    %c15_i32 = arith.constant 15 : i32
    %60 = tpu.dynamic_rotate %18 by %c15_i32 dim 2 : vector<3x8x16xf32>, i32 -> vector<3x8x16xf32>
    %c15_i32_13 = arith.constant 15 : i32
    %61 = vector.broadcast %c15_i32_13 : i32 to vector<3x8x16xi32>
    %62 = arith.cmpi eq, %9, %61 : vector<3x8x16xi32>
    %cst_14 = arith.constant 0.000000e+00 : f32
    %63 = vector.broadcast %cst_14 : f32 to vector<3x8x16xf32>
    %64 = arith.select %62, %63, %60 : vector<3x8x16xi1>, vector<3x8x16xf32>
    %65 = vector.extract_strided_slice %64 {offsets = [0, 0, 0], sizes = [1, 8, 16], strides = [1, 1, 1]} : vector<3x8x16xf32> to vector<1x8x16xf32>
    %66 = vector.shape_cast %65 : vector<1x8x16xf32> to vector<8x16xf32>
    %c2 = arith.constant 2 : index
    %67 = memref.load %arg2[%c2] : memref<81xf32, #tpu.memory_space<smem>>
    %68 = vector.broadcast %67 : f32 to vector<8x16xf32>
    %69 = arith.mulf %66, %68 : vector<8x16xf32>
    %70 = arith.addf %47, %69 : vector<8x16xf32>
    %71 = vector.extract_strided_slice %64 {offsets = [1, 0, 0], sizes = [1, 8, 16], strides = [1, 1, 1]} : vector<3x8x16xf32> to vector<1x8x16xf32>
    %72 = vector.shape_cast %71 : vector<1x8x16xf32> to vector<8x16xf32>
    %c38 = arith.constant 38 : index
    %73 = memref.load %arg2[%c38] : memref<81xf32, #tpu.memory_space<smem>>
    %74 = vector.broadcast %73 : f32 to vector<8x16xf32>
    %75 = arith.mulf %72, %74 : vector<8x16xf32>
    %76 = arith.addf %53, %75 : vector<8x16xf32>
    %77 = vector.extract_strided_slice %64 {offsets = [2, 0, 0], sizes = [1, 8, 16], strides = [1, 1, 1]} : vector<3x8x16xf32> to vector<1x8x16xf32>
    %78 = vector.shape_cast %77 : vector<1x8x16xf32> to vector<8x16xf32>
    %c74 = arith.constant 74 : index
    %79 = memref.load %arg2[%c74] : memref<81xf32, #tpu.memory_space<smem>>
    %80 = vector.broadcast %79 : f32 to vector<8x16xf32>
    %81 = arith.mulf %78, %80 : vector<8x16xf32>
    %82 = arith.addf %59, %81 : vector<8x16xf32>
    %c1_i32_15 = arith.constant 1 : i32
    %83 = tpu.dynamic_rotate %1 by %c1_i32_15 dim 2 : vector<3x8x16xf32>, i32 -> vector<3x8x16xf32>
    %c0_i32_16 = arith.constant 0 : i32
    %84 = vector.broadcast %c0_i32_16 : i32 to vector<3x8x16xi32>
    %85 = arith.cmpi eq, %9, %84 : vector<3x8x16xi32>
    %cst_17 = arith.constant 0.000000e+00 : f32
    %86 = vector.broadcast %cst_17 : f32 to vector<3x8x16xf32>
    %87 = arith.select %85, %86, %83 : vector<3x8x16xi1>, vector<3x8x16xf32>
    %88 = vector.extract_strided_slice %87 {offsets = [0, 0, 0], sizes = [1, 8, 16], strides = [1, 1, 1]} : vector<3x8x16xf32> to vector<1x8x16xf32>
    %89 = vector.shape_cast %88 : vector<1x8x16xf32> to vector<8x16xf32>
    %c3 = arith.constant 3 : index
    %90 = memref.load %arg2[%c3] : memref<81xf32, #tpu.memory_space<smem>>
    %91 = vector.broadcast %90 : f32 to vector<8x16xf32>
    %92 = arith.mulf %89, %91 : vector<8x16xf32>
    %93 = arith.addf %70, %92 : vector<8x16xf32>
    %94 = vector.extract_strided_slice %87 {offsets = [1, 0, 0], sizes = [1, 8, 16], strides = [1, 1, 1]} : vector<3x8x16xf32> to vector<1x8x16xf32>
    %95 = vector.shape_cast %94 : vector<1x8x16xf32> to vector<8x16xf32>
    %c39 = arith.constant 39 : index
    %96 = memref.load %arg2[%c39] : memref<81xf32, #tpu.memory_space<smem>>
    %97 = vector.broadcast %96 : f32 to vector<8x16xf32>
    %98 = arith.mulf %95, %97 : vector<8x16xf32>
    %99 = arith.addf %76, %98 : vector<8x16xf32>
    %100 = vector.extract_strided_slice %87 {offsets = [2, 0, 0], sizes = [1, 8, 16], strides = [1, 1, 1]} : vector<3x8x16xf32> to vector<1x8x16xf32>
    %101 = vector.shape_cast %100 : vector<1x8x16xf32> to vector<8x16xf32>
    %c75 = arith.constant 75 : index
    %102 = memref.load %arg2[%c75] : memref<81xf32, #tpu.memory_space<smem>>
    %103 = vector.broadcast %102 : f32 to vector<8x16xf32>
    %104 = arith.mulf %101, %103 : vector<8x16xf32>
    %105 = arith.addf %82, %104 : vector<8x16xf32>
    %106 = vector.extract_strided_slice %1 {offsets = [0, 0, 0], sizes = [1, 8, 16], strides = [1, 1, 1]} : vector<3x8x16xf32> to vector<1x8x16xf32>
    %107 = vector.shape_cast %106 : vector<1x8x16xf32> to vector<8x16xf32>
    %c4 = arith.constant 4 : index
    %108 = memref.load %arg2[%c4] : memref<81xf32, #tpu.memory_space<smem>>
    %109 = vector.broadcast %108 : f32 to vector<8x16xf32>
    %110 = arith.mulf %107, %109 : vector<8x16xf32>
    %111 = arith.addf %93, %110 : vector<8x16xf32>
    %112 = vector.extract_strided_slice %1 {offsets = [1, 0, 0], sizes = [1, 8, 16], strides = [1, 1, 1]} : vector<3x8x16xf32> to vector<1x8x16xf32>
    %113 = vector.shape_cast %112 : vector<1x8x16xf32> to vector<8x16xf32>
    %c40 = arith.constant 40 : index
    %114 = memref.load %arg2[%c40] : memref<81xf32, #tpu.memory_space<smem>>
    %115 = vector.broadcast %114 : f32 to vector<8x16xf32>
    %116 = arith.mulf %113, %115 : vector<8x16xf32>
    %117 = arith.addf %99, %116 : vector<8x16xf32>
    %118 = vector.extract_strided_slice %1 {offsets = [2, 0, 0], sizes = [1, 8, 16], strides = [1, 1, 1]} : vector<3x8x16xf32> to vector<1x8x16xf32>
    %119 = vector.shape_cast %118 : vector<1x8x16xf32> to vector<8x16xf32>
    %c76 = arith.constant 76 : index
    %120 = memref.load %arg2[%c76] : memref<81xf32, #tpu.memory_space<smem>>
    %121 = vector.broadcast %120 : f32 to vector<8x16xf32>
    %122 = arith.mulf %119, %121 : vector<8x16xf32>
    %123 = arith.addf %105, %122 : vector<8x16xf32>
    %c15_i32_18 = arith.constant 15 : i32
    %124 = tpu.dynamic_rotate %1 by %c15_i32_18 dim 2 : vector<3x8x16xf32>, i32 -> vector<3x8x16xf32>
    %c15_i32_19 = arith.constant 15 : i32
    %125 = vector.broadcast %c15_i32_19 : i32 to vector<3x8x16xi32>
    %126 = arith.cmpi eq, %9, %125 : vector<3x8x16xi32>
    %cst_20 = arith.constant 0.000000e+00 : f32
    %127 = vector.broadcast %cst_20 : f32 to vector<3x8x16xf32>
    %128 = arith.select %126, %127, %124 : vector<3x8x16xi1>, vector<3x8x16xf32>
    %129 = vector.extract_strided_slice %128 {offsets = [0, 0, 0], sizes = [1, 8, 16], strides = [1, 1, 1]} : vector<3x8x16xf32> to vector<1x8x16xf32>
    %130 = vector.shape_cast %129 : vector<1x8x16xf32> to vector<8x16xf32>
    %c5 = arith.constant 5 : index
    %131 = memref.load %arg2[%c5] : memref<81xf32, #tpu.memory_space<smem>>
    %132 = vector.broadcast %131 : f32 to vector<8x16xf32>
    %133 = arith.mulf %130, %132 : vector<8x16xf32>
    %134 = arith.addf %111, %133 : vector<8x16xf32>
    %135 = vector.extract_strided_slice %128 {offsets = [1, 0, 0], sizes = [1, 8, 16], strides = [1, 1, 1]} : vector<3x8x16xf32> to vector<1x8x16xf32>
    %136 = vector.shape_cast %135 : vector<1x8x16xf32> to vector<8x16xf32>
    %c41 = arith.constant 41 : index
    %137 = memref.load %arg2[%c41] : memref<81xf32, #tpu.memory_space<smem>>
    %138 = vector.broadcast %137 : f32 to vector<8x16xf32>
    %139 = arith.mulf %136, %138 : vector<8x16xf32>
    %140 = arith.addf %117, %139 : vector<8x16xf32>
    %141 = vector.extract_strided_slice %128 {offsets = [2, 0, 0], sizes = [1, 8, 16], strides = [1, 1, 1]} : vector<3x8x16xf32> to vector<1x8x16xf32>
    %142 = vector.shape_cast %141 : vector<1x8x16xf32> to vector<8x16xf32>
    %c77 = arith.constant 77 : index
    %143 = memref.load %arg2[%c77] : memref<81xf32, #tpu.memory_space<smem>>
    %144 = vector.broadcast %143 : f32 to vector<8x16xf32>
    %145 = arith.mulf %142, %144 : vector<8x16xf32>
    %146 = arith.addf %123, %145 : vector<8x16xf32>
    %c7_i32 = arith.constant 7 : i32
    %147 = tpu.dynamic_rotate %1 by %c7_i32 dim 1 : vector<3x8x16xf32>, i32 -> vector<3x8x16xf32>
    %c7_i32_21 = arith.constant 7 : i32
    %148 = vector.broadcast %c7_i32_21 : i32 to vector<3x8x16xi32>
    %149 = arith.cmpi eq, %8, %148 : vector<3x8x16xi32>
    %150 = vector.shape_cast %7 : vector<3x1x16xf32> to vector<3x1x16xf32>
    %151 = vector.broadcast %150 : vector<3x1x16xf32> to vector<3x8x16xf32>
    %152 = arith.select %149, %151, %147 : vector<3x8x16xi1>, vector<3x8x16xf32>
    %c1_i32_22 = arith.constant 1 : i32
    %153 = tpu.dynamic_rotate %152 by %c1_i32_22 dim 2 : vector<3x8x16xf32>, i32 -> vector<3x8x16xf32>
    %c0_i32_23 = arith.constant 0 : i32
    %154 = vector.broadcast %c0_i32_23 : i32 to vector<3x8x16xi32>
    %155 = arith.cmpi eq, %9, %154 : vector<3x8x16xi32>
    %cst_24 = arith.constant 0.000000e+00 : f32
    %156 = vector.broadcast %cst_24 : f32 to vector<3x8x16xf32>
    %157 = arith.select %155, %156, %153 : vector<3x8x16xi1>, vector<3x8x16xf32>
    %158 = vector.extract_strided_slice %157 {offsets = [0, 0, 0], sizes = [1, 8, 16], strides = [1, 1, 1]} : vector<3x8x16xf32> to vector<1x8x16xf32>
    %159 = vector.shape_cast %158 : vector<1x8x16xf32> to vector<8x16xf32>
    %c6 = arith.constant 6 : index
    %160 = memref.load %arg2[%c6] : memref<81xf32, #tpu.memory_space<smem>>
    %161 = vector.broadcast %160 : f32 to vector<8x16xf32>
    %162 = arith.mulf %159, %161 : vector<8x16xf32>
    %163 = arith.addf %134, %162 : vector<8x16xf32>
    %164 = vector.extract_strided_slice %157 {offsets = [1, 0, 0], sizes = [1, 8, 16], strides = [1, 1, 1]} : vector<3x8x16xf32> to vector<1x8x16xf32>
    %165 = vector.shape_cast %164 : vector<1x8x16xf32> to vector<8x16xf32>
    %c42 = arith.constant 42 : index
    %166 = memref.load %arg2[%c42] : memref<81xf32, #tpu.memory_space<smem>>
    %167 = vector.broadcast %166 : f32 to vector<8x16xf32>
    %168 = arith.mulf %165, %167 : vector<8x16xf32>
    %169 = arith.addf %140, %168 : vector<8x16xf32>
    %170 = vector.extract_strided_slice %157 {offsets = [2, 0, 0], sizes = [1, 8, 16], strides = [1, 1, 1]} : vector<3x8x16xf32> to vector<1x8x16xf32>
    %171 = vector.shape_cast %170 : vector<1x8x16xf32> to vector<8x16xf32>
    %c78 = arith.constant 78 : index
    %172 = memref.load %arg2[%c78] : memref<81xf32, #tpu.memory_space<smem>>
    %173 = vector.broadcast %172 : f32 to vector<8x16xf32>
    %174 = arith.mulf %171, %173 : vector<8x16xf32>
    %175 = arith.addf %146, %174 : vector<8x16xf32>
    %176 = vector.extract_strided_slice %152 {offsets = [0, 0, 0], sizes = [1, 8, 16], strides = [1, 1, 1]} : vector<3x8x16xf32> to vector<1x8x16xf32>
    %177 = vector.shape_cast %176 : vector<1x8x16xf32> to vector<8x16xf32>
    %c7 = arith.constant 7 : index
    %178 = memref.load %arg2[%c7] : memref<81xf32, #tpu.memory_space<smem>>
    %179 = vector.broadcast %178 : f32 to vector<8x16xf32>
    %180 = arith.mulf %177, %179 : vector<8x16xf32>
    %181 = arith.addf %163, %180 : vector<8x16xf32>
    %182 = vector.extract_strided_slice %152 {offsets = [1, 0, 0], sizes = [1, 8, 16], strides = [1, 1, 1]} : vector<3x8x16xf32> to vector<1x8x16xf32>
    %183 = vector.shape_cast %182 : vector<1x8x16xf32> to vector<8x16xf32>
    %c43 = arith.constant 43 : index
    %184 = memref.load %arg2[%c43] : memref<81xf32, #tpu.memory_space<smem>>
    %185 = vector.broadcast %184 : f32 to vector<8x16xf32>
    %186 = arith.mulf %183, %185 : vector<8x16xf32>
    %187 = arith.addf %169, %186 : vector<8x16xf32>
    %188 = vector.extract_strided_slice %152 {offsets = [2, 0, 0], sizes = [1, 8, 16], strides = [1, 1, 1]} : vector<3x8x16xf32> to vector<1x8x16xf32>
    %189 = vector.shape_cast %188 : vector<1x8x16xf32> to vector<8x16xf32>
    %c79 = arith.constant 79 : index
    %190 = memref.load %arg2[%c79] : memref<81xf32, #tpu.memory_space<smem>>
    %191 = vector.broadcast %190 : f32 to vector<8x16xf32>
    %192 = arith.mulf %189, %191 : vector<8x16xf32>
    %193 = arith.addf %175, %192 : vector<8x16xf32>
    %c15_i32_25 = arith.constant 15 : i32
    %194 = tpu.dynamic_rotate %152 by %c15_i32_25 dim 2 : vector<3x8x16xf32>, i32 -> vector<3x8x16xf32>
    %c15_i32_26 = arith.constant 15 : i32
    %195 = vector.broadcast %c15_i32_26 : i32 to vector<3x8x16xi32>
    %196 = arith.cmpi eq, %9, %195 : vector<3x8x16xi32>
    %cst_27 = arith.constant 0.000000e+00 : f32
    %197 = vector.broadcast %cst_27 : f32 to vector<3x8x16xf32>
    %198 = arith.select %196, %197, %194 : vector<3x8x16xi1>, vector<3x8x16xf32>
    %199 = vector.extract_strided_slice %198 {offsets = [0, 0, 0], sizes = [1, 8, 16], strides = [1, 1, 1]} : vector<3x8x16xf32> to vector<1x8x16xf32>
    %200 = vector.shape_cast %199 : vector<1x8x16xf32> to vector<8x16xf32>
    %c8 = arith.constant 8 : index
    %201 = memref.load %arg2[%c8] : memref<81xf32, #tpu.memory_space<smem>>
    %202 = vector.broadcast %201 : f32 to vector<8x16xf32>
    %203 = arith.mulf %200, %202 : vector<8x16xf32>
    %204 = arith.addf %181, %203 : vector<8x16xf32>
    %205 = vector.extract_strided_slice %198 {offsets = [1, 0, 0], sizes = [1, 8, 16], strides = [1, 1, 1]} : vector<3x8x16xf32> to vector<1x8x16xf32>
    %206 = vector.shape_cast %205 : vector<1x8x16xf32> to vector<8x16xf32>
    %c44 = arith.constant 44 : index
    %207 = memref.load %arg2[%c44] : memref<81xf32, #tpu.memory_space<smem>>
    %208 = vector.broadcast %207 : f32 to vector<8x16xf32>
    %209 = arith.mulf %206, %208 : vector<8x16xf32>
    %210 = arith.addf %187, %209 : vector<8x16xf32>
    %211 = vector.extract_strided_slice %198 {offsets = [2, 0, 0], sizes = [1, 8, 16], strides = [1, 1, 1]} : vector<3x8x16xf32> to vector<1x8x16xf32>
    %212 = vector.shape_cast %211 : vector<1x8x16xf32> to vector<8x16xf32>
    %c80 = arith.constant 80 : index
    %213 = memref.load %arg2[%c80] : memref<81xf32, #tpu.memory_space<smem>>
    %214 = vector.broadcast %213 : f32 to vector<8x16xf32>
    %215 = arith.mulf %212, %214 : vector<8x16xf32>
    %216 = arith.addf %193, %215 : vector<8x16xf32>
    %217 = vector.shape_cast %204 : vector<8x16xf32> to vector<1x8x16xf32>
    %218 = vector.shape_cast %210 : vector<8x16xf32> to vector<1x8x16xf32>
    %219 = vector.shape_cast %216 : vector<8x16xf32> to vector<1x8x16xf32>
    %220 = tpu.concatenate %217, %218, %219 in 0 : vector<1x8x16xf32>, vector<1x8x16xf32>, vector<1x8x16xf32> -> vector<3x8x16xf32>
    %221 = vector.shape_cast %220 : vector<3x8x16xf32> to vector<1x3x8x16xf32>
    %c0_28 = arith.constant 0 : index
    %c0_29 = arith.constant 0 : index
    %c0_30 = arith.constant 0 : index
    %c0_31 = arith.constant 0 : index
    %222 = vector.load %arg5[%c0_28, %c0_29, %c0_30, %c0_31] : memref<1x3x8x16xf32, #tpu.memory_space<vmem>>, vector<1x3x8x16xf32>
    tpu.vector_store %arg5[%c0_28, %c0_29, %c0_30, %c0_31], %221 {strides = array<i32>} : memref<1x3x8x16xf32, #tpu.memory_space<vmem>>, vector<1x3x8x16xf32>,
    return
  }
  func.func @transform_0(%arg0: i32, %arg1: i32) -> i32 {
    %c0_i32 = arith.constant 0 : i32
    %c0_i32_0 = arith.constant 0 : i32
    return %c0_i32 : i32
  }
  func.func @transform_1(%arg0: i32, %arg1: i32) -> (i32, i32, i32, i32) {
    %c0_i32 = arith.constant 0 : i32
    %c0_i32_0 = arith.constant 0 : i32
    %c0_i32_1 = arith.constant 0 : i32
    return %arg0, %c0_i32, %arg1, %c0_i32_0 : i32, i32, i32, i32
  }
  func.func @transform_2(%arg0: i32, %arg1: i32) -> (i32, i32, i32, i32) {
    %c0_i32 = arith.constant 0 : i32
    %c0_i32_0 = arith.constant 0 : i32
    %c0_i32_1 = arith.constant 0 : i32
    return %arg0, %arg1, %c0_i32, %c0_i32_0 : i32, i32, i32, i32
  }
  func.func @transform_3(%arg0: i32, %arg1: i32) -> (i32, i32, i32, i32) {
    %c0_i32 = arith.constant 0 : i32
    %c0_i32_0 = arith.constant 0 : i32
    %c0_i32_1 = arith.constant 0 : i32
    return %arg0, %c0_i32, %arg1, %c0_i32_0 : i32, i32, i32, i32
  }
}

</mosaic_0001>

<llo_original>
// kernel: tpu_custom_call.1
$region0: #{tpu_custom_call.1}
  #allocation0 [shape = 'u32[]', space=smem, size = 0x4, offset = 0x4, fixed_abs, tag = 'smem constant byte address 0x4 - core index']
  #allocation1 [shape = 'u32[144,128]{1,0:T(1,128)}', space=vmem, size = 0x12000, scoped, tag = 'internal scratch']
  %s0 = inlined_call_operand.vmem [shape: f32[81], index: 0, kind: input, shape index: {}]
  %s1 = inlined_call_operand.hbm [shape: f32[2,3,16,16], index: 1, kind: input, shape index: {}]
  %s2 = inlined_call_operand.vmem [shape: f32[2,2,6,16], index: 2, kind: input, shape index: {}]
  %s3 = inlined_call_operand.hbm [shape: f32[2,3,16,16], index: 3, kind: output, shape index: {}]
  %s4 = sld [smem:[#allocation0]]
  $region53: #{tpu_custom_call.1} parent=0
    _
  %s6 = ssub.s32 1, %s4
  %s7 = scalar_select 0, %s6, %s4
  $region1: #{tpu_custom_call.1} parent=0
    #allocation2 [shape = 'u8[512]{0}', space=smem, size = 0x200, scoped, tag = 'input window, operand 0, single buffered']
    #allocation3 [shape = 's32[2]{0}', space=sflag, size = 0x8, scoped, tag = 'scoped memory for tpu_custom_call.1']
    #allocation4 [shape = 's32[2]{0}', space=sflag, size = 0x8, scoped, tag = 'scoped memory for tpu_custom_call.1']
    #allocation5 [shape = 's32[2]{0}', space=sflag, size = 0x8, scoped, tag = 'scoped memory for tpu_custom_call.1']
    #allocation6 [shape = 'u8[24576]{0}', space=vmem, size = 0x6000, scoped, tag = 'input window, operand 1']
    #allocation7 [shape = 'u8[24576]{0}', space=vmem, size = 0x6000, scoped, tag = 'output window, operand 0']
    %8 = vsyncpa [#allocation5], 0
    %9 = vsyncpa [#allocation3], 0
    %s10 = scalar_lea.sflag [#allocation3], 1
    %11 = vsyncpa %s10, 0
    %12 = vsyncpa [#allocation4], 0
    %s13 = scalar_lea.sflag [#allocation4], 1
    %14 = vsyncpa %s13, 0
    loop: start=0, step=1, limit=6
    $region2: #{tpu_custom_call.1} parent=1 // loop_pre_header
      _
    $region3: #{tpu_custom_call.1} parent=1 // loop_header
      %s16 = sphi 0, %s20
      %p17 = scmp.ge.s32.totalorder %s16, 6
      %s23 = sphi 0, %s35
      %s24 = sphi 0, %s31
      %s25 = sphi 0, %s23
      %s26 = sphi 0, %s24
      %s27 = sphi 0, %s25
      %s28 = sphi 0, %s26
      %s36 = sphi 0, %s36
      %s38 = sphi 0, %s36
      %s39 = sphi 0, %s38
      %s53 = sphi 0, %s39
      %s61 = sphi 0, %s63
      %s64 = sphi 0, %s61
      %s65 = sphi 0, %s64
      %s81 = sphi 0, %s65
      %s89 = sphi 0, %s91
      %s92 = sphi 0, %s89
      %s93 = sphi 0, %s92
      %s109 = sphi 0, %s93
      %s117 = sphi 0, %s119
      %s120 = sphi 0, %s117
      %s121 = sphi 0, %s120
      %s137 = sphi 0, %s121
    $region4: #{tpu_custom_call.1} parent=1 // loop_header_branch
      %19 = sbr.rel (%p17) target = $region8
    $region5: #{tpu_custom_call.1} parent=1 // loop_body
      %s21 = ssub.s32 %s16, 1
      %s22 = ssub.s32 %s16, 2
      %s29 = sadd.s32 1, %s24
      %p30 = scmp.ge.s32.totalorder %s29, 2
      %s31 = scalar_select %p30, 0, %s29
      %s32 = sadd.s32 1, %s23
      %s33 = scalar_select %p30, %s32, %s23
      %p34 = scmp.ge.s32.totalorder %s33, 2
      %s35 = scalar_select %p34, 0, %s33
      %s37 = sadd.s32 %s36, 1
      %p40 = scmp.eq.s32.totalorder %s16, 3
      %p41 = scmp.ne.s32.totalorder %s36, %s38
      %p42 = scmp.eq.s32.totalorder %s16, 0
      %p43 = por %p41, %p42
      %p44 = scmp.ne.s32.totalorder %s36, %s38
      %p45 = scmp.eq.s32.totalorder %s21, 3
      %p46 = por %p44, %p45
      %p47 = scmp.ne.s32.totalorder %s38, %s39
      %p48 = scmp.eq.s32.totalorder %s21, 0
      %p49 = por %p47, %p48
      %p50 = scmp.ne.s32.totalorder %s38, %s39
      %p51 = scmp.eq.s32.totalorder %s22, 3
      %p52 = por %p50, %p51
      %p54 = scmp.ne.s32.totalorder %s39, %s53
      %p55 = scmp.eq.s32.totalorder %s22, 0
      %p56 = por %p54, %p55
      %s57 = ssub.s32 %s23, %s35
      %s58 = ssub.s32 %s24, %s31
      %s59 = sor.u32 %s57, %s58
      %p60 = scmp.eq.s32.totalorder %s59, 0
      %s62 = sadd.s32 %s61, 1
      %s63 = scalar_select %p60, %s61, %s62
      %p66 = pneg %p60
      %p67 = scmp.eq.s32.totalorder %s16, 3
      %p68 = por %p66, %p67
      %p69 = scmp.ne.s32.totalorder %s61, %s64
      %p70 = scmp.eq.s32.totalorder %s16, 0
      %p71 = por %p69, %p70
      %p72 = scmp.ne.s32.totalorder %s61, %s64
      %p73 = scmp.eq.s32.totalorder %s21, 3
      %p74 = por %p72, %p73
      %p75 = scmp.ne.s32.totalorder %s64, %s65
      %p76 = scmp.eq.s32.totalorder %s21, 0
      %p77 = por %p75, %p76
      %p78 = scmp.ne.s32.totalorder %s64, %s65
      %p79 = scmp.eq.s32.totalorder %s22, 3
      %p80 = por %p78, %p79
      %p82 = scmp.ne.s32.totalorder %s65, %s81
      %p83 = scmp.eq.s32.totalorder %s22, 0
      %p84 = por %p82, %p83
      %s85 = ssub.s32 %s23, %s35
      %s86 = ssub.s32 %s24, %s31
      %s87 = sor.u32 %s85, %s86
      %p88 = scmp.eq.s32.totalorder %s87, 0
      %s90 = sadd.s32 %s89, 1
      %s91 = scalar_select %p88, %s89, %s90
      %p94 = pneg %p88
      %p95 = scmp.eq.s32.totalorder %s16, 3
      %p96 = por %p94, %p95
      %p97 = scmp.ne.s32.totalorder %s89, %s92
      %p98 = scmp.eq.s32.totalorder %s16, 0
      %p99 = por %p97, %p98
      %p100 = scmp.ne.s32.totalorder %s89, %s92
      %p101 = scmp.eq.s32.totalorder %s21, 3
      %p102 = por %p100, %p101
      %p103 = scmp.ne.s32.totalorder %s92, %s93
      %p104 = scmp.eq.s32.totalorder %s21, 0
      %p105 = por %p103, %p104
      %p106 = scmp.ne.s32.totalorder %s92, %s93
      %p107 = scmp.eq.s32.totalorder %s22, 3
      %p108 = por %p106, %p107
      %p110 = scmp.ne.s32.totalorder %s93, %s109
      %p111 = scmp.eq.s32.totalorder %s22, 0
      %p112 = por %p110, %p111
      %s113 = ssub.s32 %s23, %s35
      %s114 = ssub.s32 %s24, %s31
      %s115 = sor.u32 %s113, %s114
      %p116 = scmp.eq.s32.totalorder %s115, 0
      %s118 = sadd.s32 %s117, 1
      %s119 = scalar_select %p116, %s117, %s118
      %p122 = pneg %p116
      %p123 = scmp.eq.s32.totalorder %s16, 3
      %p124 = por %p122, %p123
      %p125 = scmp.ne.s32.totalorder %s117, %s120
      %p126 = scmp.eq.s32.totalorder %s16, 0
      %p127 = por %p125, %p126
      %p128 = scmp.ne.s32.totalorder %s117, %s120
      %p129 = scmp.eq.s32.totalorder %s21, 3
      %p130 = por %p128, %p129
      %p131 = scmp.ne.s32.totalorder %s120, %s121
      %p132 = scmp.eq.s32.totalorder %s21, 0
      %p133 = por %p131, %p132
      %p134 = scmp.ne.s32.totalorder %s120, %s121
      %p135 = scmp.eq.s32.totalorder %s22, 3
      %p136 = por %p134, %p135
      %p138 = scmp.ne.s32.totalorder %s121, %s137
      %p139 = scmp.eq.s32.totalorder %s22, 0
      %p140 = por %p138, %p139
      %p141 = scmp.le.s32.totalorder 1, %s16
      %p142 = scmp.lt.s32.totalorder %s16, 5
      %p143 = pnand %p141, %p142
      %p144 = pneg %p143
      // Predicated region
      $region9: #{tpu_custom_call.1} parent=5 // pred_check
        _
      $region10: #{tpu_custom_call.1} parent=5 // pred_check_branch
        %146 = sbr.rel (%p143) target = $region12
      $region11: #{tpu_custom_call.1} parent=5 // pred_region
        %s147 = ssub.s32 %s16, 1
        // Predicated region
        $region13: #{tpu_custom_call.1} parent=11 // pred_check
          %p148 = pneg %p49
        $region14: #{tpu_custom_call.1} parent=11 // pred_check_branch
          %150 = sbr.rel (%p148) target = $region16
        $region15: #{tpu_custom_call.1} parent=11 // pred_region
          %s152 = ssub.s32 16, 16
          %153 = vsyncadd [#allocation5], %s152
          %s155 = sshll.u32 %s0, 4
          %s156 = int_to_ptr.vmem [resolvable:$true] %s155
          %158 = dma.vmem_to_smem %s156, 16, [#allocation2], [#allocation5]
        $region16: #{tpu_custom_call.1} parent=11 // pred_fallthru
          _
      $region12: #{tpu_custom_call.1} parent=5 // pred_fallthru
        _
      %p159 = scmp.lt.s32.totalorder %s16, 4
      // Predicated region
      $region17: #{tpu_custom_call.1} parent=5 // pred_check
        %p160 = pneg %p159
      $region18: #{tpu_custom_call.1} parent=5 // pred_check_branch
        %162 = sbr.rel (%p160) target = $region20
      $region19: #{tpu_custom_call.1} parent=5 // pred_region
        // Predicated region
        $region21: #{tpu_custom_call.1} parent=19 // pred_check
          %p163 = pneg %p71
        $region22: #{tpu_custom_call.1} parent=19 // pred_check_branch
          %165 = sbr.rel (%p163) target = $region24
        $region23: #{tpu_custom_call.1} parent=19 // pred_region
          %s166 = sand.u32 %s61, 1
          %s167 = scalar_lea.sflag [#allocation3], %s166
          %s168 = sand.u32 %s61, 1
          %s169 = smul.addr %s168, 24
          %s170 = scalar_lea.vmem [#allocation6], %s169
          %s172 = ssub.s32 384, 384
          %173 = vsyncadd %s167, %s172
          %s174 = smul.addr %s23, 6
          %s175 = sadd.s32 %s24, %s174
          %s176 = smul.addr %s175, 128
          %s177 = scalar_lea.hbm %s1, %s176
          %s178 = sshll.u32 %s170, 4
          %s179 = int_to_ptr.vmem [resolvable:$true] %s178
          %184 = dma.hbm_to_vmem [thread:$0]  %s177, 384, %s179, %s167, 256, 128, 8
        $region24: #{tpu_custom_call.1} parent=19 // pred_fallthru
          _
        // Predicated region
        $region25: #{tpu_custom_call.1} parent=19 // pred_check
          %p185 = pneg %p99
        $region26: #{tpu_custom_call.1} parent=19 // pred_check_branch
          %187 = sbr.rel (%p185) target = $region28
        $region27: #{tpu_custom_call.1} parent=19 // pred_region
          %p188 = scmp.lt.s32.totalorder %s23, 1
          %s189 = scalar_select %p188, %s23, 1
          %p190 = scmp.lt.s32.totalorder %s24, 1
          %s191 = scalar_select %p190, %s24, 1
          %s192 = smul.addr %s189, 2
          %s193 = sadd.s32 %s191, %s192
          %s194 = smul.addr %s193, 8
          %s195 = scalar_lea.vmem %s2, %s194
        $region28: #{tpu_custom_call.1} parent=19 // pred_fallthru
          _
      $region20: #{tpu_custom_call.1} parent=5 // pred_fallthru
        _
      %p196 = scmp.le.s32.totalorder 1, %s16
      %p197 = scmp.lt.s32.totalorder %s16, 5
      %p198 = pnand %p196, %p197
      %p199 = pneg %p198
      // Predicated region
      $region29: #{tpu_custom_call.1} parent=5 // pred_check
        _
      $region30: #{tpu_custom_call.1} parent=5 // pred_check_branch
        %201 = sbr.rel (%p198) target = $region32
      $region31: #{tpu_custom_call.1} parent=5 // pred_region
        %s202 = ssub.s32 %s16, 1
        // Predicated region
        $region33: #{tpu_custom_call.1} parent=31 // pred_check
          %p203 = pneg %p49
        $region34: #{tpu_custom_call.1} parent=31 // pred_check_branch
          %205 = sbr.rel (%p203) target = $region36
        $region35: #{tpu_custom_call.1} parent=31 // pred_region
          %206 = dma.done [#allocation5], 16
        $region36: #{tpu_custom_call.1} parent=31 // pred_fallthru
          _
        %s207 = sand.u32 %s64, 1
        %s208 = scalar_lea.sflag [#allocation3], %s207
        %s209 = sand.u32 %s64, 1
        %s210 = smul.addr %s209, 24
        %s211 = scalar_lea.vmem [#allocation6], %s210
        // Predicated region
        $region37: #{tpu_custom_call.1} parent=31 // pred_check
          %p212 = pneg %p77
        $region38: #{tpu_custom_call.1} parent=31 // pred_check_branch
          %214 = sbr.rel (%p212) target = $region40
        $region39: #{tpu_custom_call.1} parent=31 // pred_region
          %215 = dma.done %s208, 384
        $region40: #{tpu_custom_call.1} parent=31 // pred_fallthru
          _
        %216 = sfence
        %p217 = pneg %p49
        %p218 = pneg %p46
        %s219 = sand.u32 %s64, 1
        %s220 = scalar_lea.sflag [#allocation3], %s219
        %s221 = sand.u32 %s64, 1
        %s222 = smul.addr %s221, 24
        %s223 = scalar_lea.vmem [#allocation6], %s222
        %p224 = pneg %p77
        %p225 = pneg %p74
        %p226 = scmp.lt.s32.totalorder %s25, 1
        %s227 = scalar_select %p226, %s25, 1
        %p228 = scmp.lt.s32.totalorder %s26, 1
        %s229 = scalar_select %p228, %s26, 1
        %s230 = smul.addr %s227, 2
        %s231 = sadd.s32 %s229, %s230
        %s232 = smul.addr %s231, 8
        %s233 = scalar_lea.vmem %s2, %s232
        %p234 = pneg %p105
        %p235 = pneg %p102
        %p236 = pneg %p133
        %p237 = pneg %p130
        %s238 = sand.u32 %s120, 1
        %s239 = scalar_lea.sflag [#allocation4], %s238
        %s240 = sand.u32 %s120, 1
        %s241 = smul.addr %s240, 24
        %s242 = scalar_lea.vmem [#allocation7], %s241
        %p243 = scmp.lt.s32.totalorder %s25, 1
        %s244 = scalar_select %p243, %s25, 1
        %p245 = scmp.lt.s32.totalorder %s26, 1
        %s246 = scalar_select %p245, %s26, 1
        %s247 = smul.addr %s244, 2
        %s248 = sadd.s32 %s246, %s247
        %s249 = smul.addr %s248, 8
        %s250 = scalar_lea.vmem %s2, %s249
        %v251 = vld [vmem:[%s211] sm:$0xff]
        %v252 = vld [vmem:[%s211 + $0x8] sm:$0xff]
        %v253 = vld [vmem:[%s211 + $0x10] sm:$0xff]
        %v254 = vld [vmem:[%s250] sm:$0x3f]
        %v257 = vunpack.c.l.s4 1966171168
        %v258 = vunpack.c.0.s8 %v257
        %v259 = vlaneseq
        %v260 = vshrl.u32 %v259, 7
        %v261 = vsub.s32 %v258, %v260
        %v262 = vrot.slane %v254, %v261
        %v263 = vcombine.high %v262, %v262
        %v265 = vunpack.c.l.s4 1966171168
        %v266 = vunpack.c.0.s8 %v265
        %v267 = vlaneseq
        %v268 = vshrl.u32 %v267, 7
        %v269 = vsub.s32 %v266, %v268
        %v270 = vrot.slane %v262, %v269
        %v272 = vunpack.c.l.s4 1966171168
        %v273 = vunpack.c.0.s8 %v272
        %v274 = vlaneseq
        %v275 = vshrl.u32 %v274, 7
        %v276 = vsub.s32 %v273, %v275
        %v277 = vrot.slane %v263, %v276
        %v278 = vcombine.high %v270, %v270
        %v279 = vcombine.high %v254, %v254
        %v281 = vunpack.c.l.s4 1966171168
        %v282 = vunpack.c.0.s8 %v281
        %v283 = vlaneseq
        %v284 = vshrl.u32 %v283, 7
        %v285 = vsub.s32 %v282, %v284
        %v286 = vrot.slane %v279, %v285
        %v287 = vcombine.high %v286, %v286
        %v289 = vunpack.c.l.s4 1966171168
        %v290 = vunpack.c.0.s8 %v289
        %v291 = vlaneseq
        %v292 = vshrl.u32 %v291, 7
        %v293 = vsub.s32 %v290, %v292
        %v294 = vrot.slane %v286, %v293
        %v296 = vunpack.c.l.s4 1966171168
        %v297 = vunpack.c.0.s8 %v296
        %v298 = vlaneseq
        %v299 = vshrl.u32 %v298, 7
        %v300 = vsub.s32 %v297, %v299
        %v301 = vrot.slane %v287, %v300
        %v302 = vcombine.high %v277, %v277
        %v303 = vlaneseq
        %v304 = vshrl.u32 %v303, 7
        %v305 = vlaneseq
        %v306 = vand.u32 %v305, 127
        %v307 = vrot.slane %v251, 7
        %v308 = vrot.slane %v252, 7
        %v309 = vrot.slane %v253, 7
        %vm310 = vcmp.eq.s32.totalorder %v304, 0
        %v311 = vlaneseq
        %v312 = vshrl.u32 %v311, 7
        %v313 = vsub.s32 0, %v312
        %v314 = vrot.slane %v270, %v313
        %v315 = vlaneseq
        %v316 = vshrl.u32 %v315, 7
        %v317 = vsub.s32 0, %v316
        %v318 = vrot.slane %v277, %v317
        %v319 = vlaneseq
        %v320 = vshrl.u32 %v319, 7
        %v321 = vsub.s32 0, %v320
        %v322 = vrot.slane %v278, %v321
        %v326 = vsel %vm310, %v314, %v307
        %v327 = vsel %vm310, %v318, %v308
        %v328 = vsel %vm310, %v322, %v309
        %vm329 = vcmask 1047680
        %330 = vrot.lane.b32.xlu0 %v326, 16
        %v331 = vpop.permute.xlu0 %330
        %v332 = vsel %vm329, %v331, %v326
        %333 = vrot.lane.b32.xlu0 %v327, 16
        %v334 = vpop.permute.xlu0 %333
        %v335 = vsel %vm329, %v334, %v327
        %336 = vrot.lane.b32.xlu0 %v328, 16
        %v337 = vpop.permute.xlu0 %336
        %v338 = vsel %vm329, %v337, %v328
        %339 = vrot.lane.b32.xlu0 %v332, 16
        %v340 = vpop.permute.xlu0 %339
        %341 = vrot.lane.b32.xlu0 %v335, 16
        %v342 = vpop.permute.xlu0 %341
        %343 = vrot.lane.b32.xlu0 %v338, 16
        %v344 = vpop.permute.xlu0 %343
        %v345 = vsel %vm329, %v340, %v326
        %v346 = vsel %vm329, %v342, %v327
        %v347 = vsel %vm329, %v344, %v328
        %vm348 = vcmp.eq.s32.totalorder %v306, 0
        %352 = vrot.lane.b32.xlu0 %v345, 113
        %v353 = vpop.permute.xlu0 %352
        %354 = vrot.lane.b32.xlu0 %v346, 113
        %v355 = vpop.permute.xlu0 %354
        %356 = vrot.lane.b32.xlu0 %v347, 113
        %v357 = vpop.permute.xlu0 %356
        %v361 = vsel %vm348, 0.0, %v353
        %v362 = vsel %vm348, 0.0, %v355
        %v363 = vsel %vm348, 0.0, %v357
        %s364 = sld [smem:[#allocation2]]
        %v365 = vstv %s364
        %v366 = vmul.f32 %v361, %v365
        %v367 = vadd.f32 %v366, 0.0
        %s368 = sld [smem:[#allocation2 + $0x24]]
        %v369 = vstv %s368
        %v370 = vmul.f32 %v362, %v369
        %v371 = vadd.f32 %v370, 0.0
        %s372 = sld [smem:[#allocation2 + $0x48]]
        %v373 = vstv %s372
        %v374 = vmul.f32 %v363, %v373
        %v375 = vadd.f32 %v374, 0.0
        %s376 = sld [smem:[#allocation2 + $0x1]]
        %v377 = vstv %s376
        %v378 = vmul.f32 %v326, %v377
        %v379 = vadd.f32 %v367, %v378
        %s380 = sld [smem:[#allocation2 + $0x25]]
        %v381 = vstv %s380
        %v382 = vmul.f32 %v327, %v381
        %v383 = vadd.f32 %v371, %v382
        %s384 = sld [smem:[#allocation2 + $0x49]]
        %v385 = vstv %s384
        %v386 = vmul.f32 %v328, %v385
        %v387 = vadd.f32 %v375, %v386
        %vm388 = vcmp.eq.s32.totalorder %v306, 15
        %389 = vrot.lane.b32.xlu0 %v345, 127
        %v390 = vpop.permute.xlu0 %389
        %391 = vrot.lane.b32.xlu0 %v346, 127
        %v392 = vpop.permute.xlu0 %391
        %393 = vrot.lane.b32.xlu0 %v347, 127
        %v394 = vpop.permute.xlu0 %393
        %v398 = vsel %vm388, 0.0, %v390
        %v399 = vsel %vm388, 0.0, %v392
        %v400 = vsel %vm388, 0.0, %v394
        %s401 = sld [smem:[#allocation2 + $0x2]]
        %v402 = vstv %s401
        %v403 = vmul.f32 %v398, %v402
        %v404 = vadd.f32 %v379, %v403
        %s405 = sld [smem:[#allocation2 + $0x26]]
        %v406 = vstv %s405
        %v407 = vmul.f32 %v399, %v406
        %v408 = vadd.f32 %v383, %v407
        %s409 = sld [smem:[#allocation2 + $0x4a]]
        %v410 = vstv %s409
        %v411 = vmul.f32 %v400, %v410
        %v412 = vadd.f32 %v387, %v411
        %413 = vrot.lane.b32.xlu0 %v251, 16
        %v414 = vpop.permute.xlu0 %413
        %v415 = vsel %vm329, %v414, %v251
        %416 = vrot.lane.b32.xlu0 %v252, 16
        %v417 = vpop.permute.xlu0 %416
        %v418 = vsel %vm329, %v417, %v252
        %419 = vrot.lane.b32.xlu0 %v253, 16
        %v420 = vpop.permute.xlu0 %419
        %v421 = vsel %vm329, %v420, %v253
        %422 = vrot.lane.b32.xlu0 %v415, 16
        %v423 = vpop.permute.xlu0 %422
        %424 = vrot.lane.b32.xlu0 %v418, 16
        %v425 = vpop.permute.xlu0 %424
        %426 = vrot.lane.b32.xlu0 %v421, 16
        %v427 = vpop.permute.xlu0 %426
        %v428 = vsel %vm329, %v423, %v251
        %v429 = vsel %vm329, %v425, %v252
        %v430 = vsel %vm329, %v427, %v253
        %434 = vrot.lane.b32.xlu0 %v428, 113
        %v435 = vpop.permute.xlu0 %434
        %436 = vrot.lane.b32.xlu0 %v429, 113
        %v437 = vpop.permute.xlu0 %436
        %438 = vrot.lane.b32.xlu0 %v430, 113
        %v439 = vpop.permute.xlu0 %438
        %v443 = vsel %vm348, 0.0, %v435
        %v444 = vsel %vm348, 0.0, %v437
        %v445 = vsel %vm348, 0.0, %v439
        %s446 = sld [smem:[#allocation2 + $0x3]]
        %v447 = vstv %s446
        %v448 = vmul.f32 %v443, %v447
        %v449 = vadd.f32 %v404, %v448
        %s450 = sld [smem:[#allocation2 + $0x27]]
        %v451 = vstv %s450
        %v452 = vmul.f32 %v444, %v451
        %v453 = vadd.f32 %v408, %v452
        %s454 = sld [smem:[#allocation2 + $0x4b]]
        %v455 = vstv %s454
        %v456 = vmul.f32 %v445, %v455
        %v457 = vadd.f32 %v412, %v456
        %s458 = sld [smem:[#allocation2 + $0x4]]
        %v459 = vstv %s458
        %v460 = vmul.f32 %v251, %v459
        %v461 = vadd.f32 %v449, %v460
        %s462 = sld [smem:[#allocation2 + $0x28]]
        %v463 = vstv %s462
        %v464 = vmul.f32 %v252, %v463
        %v465 = vadd.f32 %v453, %v464
        %s466 = sld [smem:[#allocation2 + $0x4c]]
        %v467 = vstv %s466
        %v468 = vmul.f32 %v253, %v467
        %v469 = vadd.f32 %v457, %v468
        %470 = vrot.lane.b32.xlu0 %v428, 127
        %v471 = vpop.permute.xlu0 %470
        %472 = vrot.lane.b32.xlu0 %v429, 127
        %v473 = vpop.permute.xlu0 %472
        %474 = vrot.lane.b32.xlu0 %v430, 127
        %v475 = vpop.permute.xlu0 %474
        %v479 = vsel %vm388, 0.0, %v471
        %v480 = vsel %vm388, 0.0, %v473
        %v481 = vsel %vm388, 0.0, %v475
        %s482 = sld [smem:[#allocation2 + $0x5]]
        %v483 = vstv %s482
        %v484 = vmul.f32 %v479, %v483
        %v485 = vadd.f32 %v461, %v484
        %s486 = sld [smem:[#allocation2 + $0x29]]
        %v487 = vstv %s486
        %v488 = vmul.f32 %v480, %v487
        %v489 = vadd.f32 %v465, %v488
        %s490 = sld [smem:[#allocation2 + $0x4d]]
        %v491 = vstv %s490
        %v492 = vmul.f32 %v481, %v491
        %v493 = vadd.f32 %v469, %v492
        %v494 = vrot.slane %v251, 1
        %v495 = vrot.slane %v252, 1
        %v496 = vrot.slane %v253, 1
        %vm497 = vcmp.eq.s32.totalorder %v304, 7
        %v498 = vlaneseq
        %v499 = vshrl.u32 %v498, 7
        %v500 = vsub.s32 0, %v499
        %v501 = vrot.slane %v302, %v500
        %v502 = vlaneseq
        %v503 = vshrl.u32 %v502, 7
        %v504 = vsub.s32 0, %v503
        %v505 = vrot.slane %v294, %v504
        %v506 = vlaneseq
        %v507 = vshrl.u32 %v506, 7
        %v508 = vsub.s32 0, %v507
        %v509 = vrot.slane %v301, %v508
        %v513 = vsel %vm497, %v501, %v494
        %v514 = vsel %vm497, %v505, %v495
        %v515 = vsel %vm497, %v509, %v496
        %516 = vrot.lane.b32.xlu0 %v513, 16
        %v517 = vpop.permute.xlu0 %516
        %v518 = vsel %vm329, %v517, %v513
        %519 = vrot.lane.b32.xlu0 %v514, 16
        %v520 = vpop.permute.xlu0 %519
        %v521 = vsel %vm329, %v520, %v514
        %522 = vrot.lane.b32.xlu0 %v515, 16
        %v523 = vpop.permute.xlu0 %522
        %v524 = vsel %vm329, %v523, %v515
        %525 = vrot.lane.b32.xlu0 %v518, 16
        %v526 = vpop.permute.xlu0 %525
        %527 = vrot.lane.b32.xlu0 %v521, 16
        %v528 = vpop.permute.xlu0 %527
        %529 = vrot.lane.b32.xlu0 %v524, 16
        %v530 = vpop.permute.xlu0 %529
        %v531 = vsel %vm329, %v526, %v513
        %v532 = vsel %vm329, %v528, %v514
        %v533 = vsel %vm329, %v530, %v515
        %537 = vrot.lane.b32.xlu0 %v531, 113
        %v538 = vpop.permute.xlu0 %537
        %539 = vrot.lane.b32.xlu0 %v532, 113
        %v540 = vpop.permute.xlu0 %539
        %541 = vrot.lane.b32.xlu0 %v533, 113
        %v542 = vpop.permute.xlu0 %541
        %v546 = vsel %vm348, 0.0, %v538
        %v547 = vsel %vm348, 0.0, %v540
        %v548 = vsel %vm348, 0.0, %v542
        %s549 = sld [smem:[#allocation2 + $0x6]]
        %v550 = vstv %s549
        %v551 = vmul.f32 %v546, %v550
        %v552 = vadd.f32 %v485, %v551
        %s553 = sld [smem:[#allocation2 + $0x2a]]
        %v554 = vstv %s553
        %v555 = vmul.f32 %v547, %v554
        %v556 = vadd.f32 %v489, %v555
        %s557 = sld [smem:[#allocation2 + $0x4e]]
        %v558 = vstv %s557
        %v559 = vmul.f32 %v548, %v558
        %v560 = vadd.f32 %v493, %v559
        %s561 = sld [smem:[#allocation2 + $0x7]]
        %v562 = vstv %s561
        %v563 = vmul.f32 %v513, %v562
        %v564 = vadd.f32 %v552, %v563
        %s565 = sld [smem:[#allocation2 + $0x2b]]
        %v566 = vstv %s565
        %v567 = vmul.f32 %v514, %v566
        %v568 = vadd.f32 %v556, %v567
        %s569 = sld [smem:[#allocation2 + $0x4f]]
        %v570 = vstv %s569
        %v571 = vmul.f32 %v515, %v570
        %v572 = vadd.f32 %v560, %v571
        %573 = vrot.lane.b32.xlu0 %v531, 127
        %v574 = vpop.permute.xlu0 %573
        %575 = vrot.lane.b32.xlu0 %v532, 127
        %v576 = vpop.permute.xlu0 %575
        %577 = vrot.lane.b32.xlu0 %v533, 127
        %v578 = vpop.permute.xlu0 %577
        %v582 = vsel %vm388, 0.0, %v574
        %v583 = vsel %vm388, 0.0, %v576
        %v584 = vsel %vm388, 0.0, %v578
        %s585 = sld [smem:[#allocation2 + $0x8]]
        %v586 = vstv %s585
        %v587 = vmul.f32 %v582, %v586
        %v588 = vadd.f32 %v564, %v587
        %s589 = sld [smem:[#allocation2 + $0x2c]]
        %v590 = vstv %s589
        %v591 = vmul.f32 %v583, %v590
        %v592 = vadd.f32 %v568, %v591
        %s593 = sld [smem:[#allocation2 + $0x50]]
        %v594 = vstv %s593
        %v595 = vmul.f32 %v584, %v594
        %v596 = vadd.f32 %v572, %v595
        %vm597 = vcmask 130048
        %598 = vst.msk [vmem:[%s242] sm:$0xff] %vm597, %v588
        %599 = vst.msk [vmem:[%s242 + $0x8] sm:$0xff] %vm597, %v592
        %600 = vst.msk [vmem:[%s242 + $0x10] sm:$0xff] %vm597, %v596
        %s601 = sand.u32 %s120, 1
        %s602 = scalar_lea.sflag [#allocation4], %s601
        %s603 = sand.u32 %s120, 1
        %s604 = smul.addr %s603, 24
        %s605 = scalar_lea.vmem [#allocation7], %s604
        // Predicated region
        $region41: #{tpu_custom_call.1} parent=31 // pred_check
          %p606 = pneg %p130
        $region42: #{tpu_custom_call.1} parent=31 // pred_check_branch
          %608 = sbr.rel (%p606) target = $region44
        $region43: #{tpu_custom_call.1} parent=31 // pred_region
          %s610 = ssub.s32 384, 384
          %611 = vsyncadd %s602, %s610
          %s612 = smul.addr %s25, 6
          %s613 = sadd.s32 %s26, %s612
          %s614 = smul.addr %s613, 128
          %s615 = scalar_lea.hbm %s3, %s614
          %s616 = sshll.u32 %s605, 4
          %s617 = int_to_ptr.vmem [resolvable:$true] %s616
          %622 = dma.vmem_to_hbm [thread:$0]  %s617, 384, %s615, %s602, 128, 256, 8
        $region44: #{tpu_custom_call.1} parent=31 // pred_fallthru
          _
      $region32: #{tpu_custom_call.1} parent=5 // pred_fallthru
        _
      %p623 = scmp.le.s32.totalorder 2, %s16
      // Predicated region
      $region45: #{tpu_custom_call.1} parent=5 // pred_check
        %p624 = pneg %p623
      $region46: #{tpu_custom_call.1} parent=5 // pred_check_branch
        %626 = sbr.rel (%p624) target = $region48
      $region47: #{tpu_custom_call.1} parent=5 // pred_region
        %s627 = ssub.s32 %s16, 2
        // Predicated region
        $region49: #{tpu_custom_call.1} parent=47 // pred_check
          %p628 = pneg %p136
        $region50: #{tpu_custom_call.1} parent=47 // pred_check_branch
          %630 = sbr.rel (%p628) target = $region52
        $region51: #{tpu_custom_call.1} parent=47 // pred_region
          %s631 = sand.u32 %s121, 1
          %s632 = scalar_lea.sflag [#allocation4], %s631
          %s633 = sand.u32 %s121, 1
          %s634 = smul.addr %s633, 24
          %s635 = scalar_lea.vmem [#allocation7], %s634
          %636 = dma.done %s632, 384
        $region52: #{tpu_custom_call.1} parent=47 // pred_fallthru
          _
      $region48: #{tpu_custom_call.1} parent=5 // pred_fallthru
        _
    $region6: #{tpu_custom_call.1} parent=1 // loop_footer
      %s20 = sadd.s32 1, %s16
    $region7: #{tpu_custom_call.1} parent=1 // loop_footer_branch
      %15 = sbr.rel target = $region3
    $region8: #{tpu_custom_call.1} parent=1 // loop_exit
      _
    %637 = vsyncpa [#allocation3], 1
    %s638 = scalar_lea.sflag [#allocation3], 1
    %639 = vsyncpa %s638, 1
    %640 = vsyncpa [#allocation4], 1
    %s641 = scalar_lea.sflag [#allocation4], 1
    %642 = vsyncpa %s641, 1
    %643 = vsyncpa [#allocation5], 1
    %s644 = scalar_lea.sflag [#allocation5], 1
    %645 = vsyncpa %s644, 1

</llo_original>
